<compile_context>
chip_gen: v7x
topology: tpu7x:2x2x1
jax: 0.10.0
libtpu: 0.0.40
codegen_flags: <defaults>
</compile_context>

<pallas_src>
import functools

import jax
import jax.numpy as jnp
from jax import lax
from jax.experimental import pallas as pl
from jax.experimental.pallas import tpu as pltpu

LANES = 128


def _tpu_row_target():
    """Rows per grid step: ~1 MiB/operand-half on v5e, ~2 MiB on v6e/v7x."""
    try:
        kind = jax.devices()[0].device_kind.lower()
    except Exception:
        return 2048
    for old in ("v2", "v3", "v4", "v5"):
        if old in kind:
            return 2048
    return 4096


def _tpu_num_cores():
    """Number of TensorCores per chip (2 on v7x, 1 on earlier generations)."""
    try:
        info = pltpu.get_tpu_info()
        for name in ("num_cores", "core_count", "num_tensorcores",
                     "tensorcore_count", "cores_per_chip"):
            v = getattr(info, name, None)
            if isinstance(v, int) and v > 0:
                return 2 if v >= 2 else 1
    except Exception:
        pass
    try:
        if "v7" in jax.devices()[0].device_kind.lower():
            return 2
    except Exception:
        pass
    return 1


def _gaussian_mse_kernel(in0_ref, tgt_ref, out_ref, *, logvar_loss,
                         tile_b, tile_r, valid_b, valid_r,
                         mask_b, mask_r, split_rows, nbh):
    bb = pl.program_id(0)
    jr = pl.program_id(1)

    # Output block is resident across the reduction axis (same block index for
    # every jr): zero it on the first reduction step.
    @pl.when(jr == 0)
    def _init():
        out_ref[...] = jnp.zeros_like(out_ref)

    if logvar_loss:
        # Fused (TB, 2, TR, 128) block: slice the two halves straight off the ref.
        mu = in0_ref[:, 0, :, :].astype(jnp.float32)   # (TB, TR, 128)
        lv = in0_ref[:, 1, :, :].astype(jnp.float32)   # (TB, TR, 128)
    else:
        mu = in0_ref[...].astype(jnp.float32)          # (TB, TR, 128)
        lv = None
    tgt = tgt_ref[...].astype(jnp.float32)             # (TB, TR, 128)

    diff = tgt - mu
    val = diff * diff
    if logvar_loss:
        val = lv + val * jnp.exp(-lv)                  # exp -> EUP slot (free here)

    # Ragged tails: this code is only emitted when the grid over-covers the
    # array.  Narrow iotas + one select (NaN/Inf-safe w.r.t. garbage lanes).
    if mask_r or mask_b:
        if split_rows:
            row0 = (bb * nbh + jr) * tile_r
            b0 = 0
        else:
            row0 = jr * tile_r
            b0 = bb * tile_b
        keep = None
        if mask_r:
            r_id = row0 + lax.broadcasted_iota(jnp.int32, (1, tile_r, 1), 1)
            keep = r_id < valid_r
        if mask_b:
            b_id = b0 + lax.broadcasted_iota(jnp.int32, (tile_b, 1, 1), 0)
            kb = b_id < valid_b
            keep = kb if keep is None else (keep & kb)
        val = jnp.where(keep, val, 0.0)

    # Fold to a 128-lane partial; accumulate into the resident output block.
    part = jnp.sum(val, axis=0)                        # (TR, 128) VPU adds
    part = jnp.sum(part, axis=0, keepdims=True)        # (1, 128)  sublane fold
    out_ref[...] += part[None]                         # (1, 1, 128)


def _reference(mu_logvar, target, logvar_loss=True):
    """Pure-JAX fused reduction (also the small-input / ragged-lane fallback)."""
    c = mu_logvar.shape[1] // 2
    mu = mu_logvar[:, :c].astype(jnp.float32)
    logvar = mu_logvar[:, c:].astype(jnp.float32)
    se = (target.astype(jnp.float32) - mu) ** 2
    if logvar_loss:
        return jnp.mean(logvar + se * jnp.exp(-logvar))
    return jnp.mean(se)


def gaussian_mse_loss(mu_logvar, target, logvar_loss=True, *,
                      min_pallas_bytes=2 << 20, num_cores=None, row_target=None):
    """Pallas implementation of GaussianMSELoss.forward.

    mu_logvar: (B, 2C, *rest)  -- chunked in half along dim=1
    target:    (B, C, *rest)
    Returns a scalar float32.  bf16 inputs are streamed un-upcast (HBM win);
    the math is done in float32 inside the kernel.
    """
    B = mu_logvar.shape[0]
    C2 = mu_logvar.shape[1]
    assert C2 % 2 == 0, "channel dim must be even for chunk(2, dim=1)"
    N = C2 // 2
    for d in mu_logvar.shape[2:]:
        N *= d
    n_true = B * N

    ml_item = jnp.dtype(mu_logvar.dtype).itemsize
    tg_item = jnp.dtype(target.dtype).itemsize
    total_bytes = mu_logvar.size * ml_item + target.size * tg_item

    # Fallbacks: (a) tiny inputs -- the fixed pallas_call + per-step cost
    # dominates, XLA's fused reduction is faster; (b) per-sample element count
    # not a multiple of 128 -- the fused reduction reads each operand once,
    # whereas padding would add a full HBM read+write of both operands.
    # TODO(synk): pad-free in-kernel lane-tail masking for N % 128 != 0.
    if (N == 0) or (N % LANES != 0) or (total_bytes < min_pallas_bytes):
        return _reference(mu_logvar, target, logvar_loss)

    R = N // LANES
    ml4 = mu_logvar.reshape(B, 2, R, LANES)   # free (contiguous) reshape
    tg3 = target.reshape(B, R, LANES)         # free (contiguous) reshape

    ncores = _tpu_num_cores() if num_cores is None else max(1, int(num_cores))
    row_target = _tpu_row_target() if row_target is None else int(row_target)

    # ---- Tile selection (~1-2 MiB per operand per grid step) ----------------
    if R >= row_target:
        TR, TB = row_target, 1                # multiple of 8 (and 16 for bf16)
    else:
        TR = R                                # full dim: always a legal block dim
        TB = min(B, max(1, row_target // max(R, 1)))
        if ncores >= 2 and B >= 2:
            # Keep >= 2 batch blocks so both TensorCores stream (v7x only).
            TB = min(TB, -(-B // 2))
    NB = -(-R // TR)
    NBB = -(-B // TB)

    # 2-TC chip with a single batch block: split the reduction/row axis 2-way so
    # both cores get a parallel block (mem-bound kernel, ~2x aggregate HBM BW).
    split_rows = (ncores >= 2) and (NBB == 1) and (NB >= 2)

    if split_rows:
        NBh = -(-NB // 2)
        grid = (2, NBh)
        G = 2
        covered_rows = 2 * NBh * TR
        mask_b = False
        last_blk = NB - 1

        def _rblk(bb, jr):
            # Clamp the fetched block index; the kernel masks the duplicated /
            # out-of-range logical rows to zero.
            return jnp.minimum(bb * NBh + jr, last_blk)

        mulv_map = lambda bb, jr: (0, 0, _rblk(bb, jr), 0)
        tgt_map = lambda bb, jr: (0, _rblk(bb, jr), 0)
    else:
        NBh = 0
        grid = (NBB, NB)
        G = NBB
        covered_rows = NB * TR
        mask_b = (NBB * TB != B)
        mulv_map = lambda bb, jr: (bb, 0, jr, 0)
        tgt_map = lambda bb, jr: (bb, jr, 0)
    mask_r = (covered_rows != R)
    out_map = lambda bb, jr: (bb, 0, 0)

    kernel = functools.partial(
        _gaussian_mse_kernel, logvar_loss=logvar_loss,
        tile_b=TB, tile_r=TR, valid_b=B, valid_r=R,
        mask_b=mask_b, mask_r=mask_r, split_rows=split_rows, nbh=NBh)

    tg_spec = pl.BlockSpec((TB, TR, LANES), tgt_map)
    out_spec = pl.BlockSpec((1, 1, LANES), out_map)
    if logvar_loss:
        # One contiguous DMA stream carries both halves (mu and logvar).
        in_specs = [pl.BlockSpec((TB, 2, TR, LANES), mulv_map), tg_spec]
    else:
        # Only the mu half is ever read from HBM.
        in_specs = [pl.BlockSpec((TB, pl.Squeezed(), TR, LANES), mulv_map), tg_spec]

    bytes_in = (2 if logvar_loss else 1) * B * N * ml_item + B * N * tg_item
    cost = pl.CostEstimate(
        flops=4 * n_true,
        transcendentals=(n_true if logvar_loss else 0),
        bytes_accessed=int(bytes_in + G * LANES * 4))

    partials = pl.pallas_call(
        kernel,
        out_shape=jax.ShapeDtypeStruct((G, 1, LANES), jnp.float32),
        grid_spec=pltpu.PrefetchScalarGridSpec(
            num_scalar_prefetch=0,
            grid=grid,
            in_specs=in_specs,
            out_specs=out_spec),
        compiler_params=pltpu.CompilerParams(
            dimension_semantics=("parallel", "arbitrary"),
            vmem_limit_bytes=32 * 1024 * 1024),
        cost_estimate=cost,
    )(ml4, tg3)

    # Final (tiny) cross-lane reduction + mean over the true element count.
    return jnp.sum(partials) / jnp.float32(n_true)


if __name__ == "__main__":
    key = jax.random.PRNGKey(0)
    ks = jax.random.split(key, 12)

    # 1) Small demo shape, forced through the Pallas kernel (both loss modes).
    B, C, H, W = 2, 4, 16, 16
    ml = jax.random.normal(ks[0], (B, 2 * C, H, W), dtype=jnp.float32)
    tg = jax.random.normal(ks[1], (B, C, H, W), dtype=jnp.float32)
    for lvl in (True, False):
        out = jax.block_until_ready(
            gaussian_mse_loss(ml, tg, logvar_loss=lvl, min_pallas_bytes=0))
        ref = _reference(ml, tg, logvar_loss=lvl)
        assert jnp.allclose(out, ref, rtol=1e-5, atol=1e-5), (lvl, out, ref)

    # 2) Medium shape: takes the kernel path with default thresholds.
    B, C, H, W = 8, 16, 64, 32
    ml = jax.random.normal(ks[2], (B, 2 * C, H, W), dtype=jnp.float32)
    tg = jax.random.normal(ks[3], (B, C, H, W), dtype=jnp.float32)
    out = jax.block_until_ready(gaussian_mse_loss(ml, tg))
    assert jnp.allclose(out, _reference(ml, tg), rtol=1e-4, atol=1e-5)

    # 3) B == 1 with many rows: exercises the 2-way row split (v7x path),
    #    incl. ragged-row masking and index clamping, on any hardware.
    B, C, H, W = 1, 9, 256, 256
    ml = jax.random.normal(ks[4], (B, 2 * C, H, W), dtype=jnp.float32)
    tg = jax.random.normal(ks[5], (B, C, H, W), dtype=jnp.float32)
    out = jax.block_until_ready(gaussian_mse_loss(ml, tg, num_cores=2))
    assert jnp.allclose(out, _reference(ml, tg), rtol=1e-4, atol=1e-5)

    # 4) Ragged batch tiles (B=3 split into batch blocks of 2 -> mask_b path).
    B, C, H, W = 3, 2, 32, 32
    ml = jax.random.normal(ks[6], (B, 2 * C, H, W), dtype=jnp.float32)
    tg = jax.random.normal(ks[7], (B, C, H, W), dtype=jnp.float32)
    out = jax.block_until_ready(
        gaussian_mse_loss(ml, tg, num_cores=2, min_pallas_bytes=0))
    assert jnp.allclose(out, _reference(ml, tg), rtol=1e-4, atol=1e-5)

    # 5) bf16 pass-through (inputs stay bf16 on the wire; math in f32).
    B, C, H, W = 2, 4, 16, 16
    mlb = jax.random.normal(ks[8], (B, 2 * C, H, W), jnp.float32).astype(jnp.bfloat16)
    tgb = jax.random.normal(ks[9], (B, C, H, W), jnp.float32).astype(jnp.bfloat16)
    out = jax.block_until_ready(gaussian_mse_loss(mlb, tgb, min_pallas_bytes=0))
    refb = _reference(mlb, tgb)
    assert jnp.allclose(out, refb, rtol=1e-4, atol=1e-4), (out, refb)

    # 6) Tiny-input fallback (default threshold -> pure-JAX path).
    out = jax.block_until_ready(gaussian_mse_loss(mlb, tgb))
    assert jnp.allclose(out, refb, rtol=1e-4, atol=1e-4)

    # 7) Ragged-lane fallback (per-sample size not a multiple of 128).
    ml_odd = jax.random.normal(ks[10], (2, 6, 5, 7), dtype=jnp.float32)
    tg_odd = jax.random.normal(ks[11], (2, 3, 5, 7), dtype=jnp.float32)
    out = jax.block_until_ready(gaussian_mse_loss(ml_odd, tg_odd, min_pallas_bytes=0))
    assert jnp.allclose(out, _reference(ml_odd, tg_odd), rtol=1e-5, atol=1e-5)

    print("KERNEL_OK")
</pallas_src>

<mosaic_0001>
module attributes {stable_mosaic.version = 11 : i64} {
  func.func @_gaussian_mse_kernel(%arg0: i32, %arg1: i32, %arg2: memref<2x2x8x128xf32, #tpu.memory_space<vmem>>, %arg3: memref<2x8x128xf32, #tpu.memory_space<vmem>>, %arg4: memref<1x1x128xf32, #tpu.memory_space<vmem>>) attributes {dimension_semantics = [#tpu.dimension_semantics<parallel>, #tpu.dimension_semantics<arbitrary>], iteration_bounds = array<i64: 1, 1>, scalar_prefetch = 0 : i64, scratch_operands = 0 : i64, tpu.core_type = #tpu.core_type<tc>, window_params = [{transform_indices = @transform_0, window_bounds = array<i64: 2, 2, 8, 128>}, {transform_indices = @transform_1, window_bounds = array<i64: 2, 8, 128>}, {transform_indices = @transform_2, window_bounds = array<i64: 1, 1, 128>}]} {
    %c0_i32 = arith.constant 0 : i32
    %0 = arith.cmpi eq, %arg1, %c0_i32 : i32
    %1 = arith.extui %0 : i1 to i32
    %c0_i32_0 = arith.constant 0 : i32
    %2 = arith.cmpi ne, %1, %c0_i32_0 : i32
    scf.if %2 {
      %cst_18 = arith.constant 0.000000e+00 : f32
      %22 = vector.broadcast %cst_18 : f32 to vector<1x1x128xf32>
      %c0_19 = arith.constant 0 : index
      %c0_20 = arith.constant 0 : index
      %c0_21 = arith.constant 0 : index
      %23 = vector.load %arg4[%c0_19, %c0_20, %c0_21] : memref<1x1x128xf32, #tpu.memory_space<vmem>>, vector<1x1x128xf32>
      tpu.vector_store %arg4[%c0_19, %c0_20, %c0_21], %22 {strides = array<i32>} : memref<1x1x128xf32, #tpu.memory_space<vmem>>, vector<1x1x128xf32>,
    } else {
    }
    %c0 = arith.constant 0 : index
    %c0_1 = arith.constant 0 : index
    %c0_2 = arith.constant 0 : index
    %c0_3 = arith.constant 0 : index
    %3 = vector.load %arg2[%c0, %c0_1, %c0_2, %c0_3] : memref<2x2x8x128xf32, #tpu.memory_space<vmem>>, vector<2x1x8x128xf32>
    %4 = vector.shape_cast %3 : vector<2x1x8x128xf32> to vector<2x8x128xf32>
    %c0_4 = arith.constant 0 : index
    %c1 = arith.constant 1 : index
    %c0_5 = arith.constant 0 : index
    %c0_6 = arith.constant 0 : index
    %5 = vector.load %arg2[%c0_4, %c1, %c0_5, %c0_6] : memref<2x2x8x128xf32, #tpu.memory_space<vmem>>, vector<2x1x8x128xf32>
    %6 = vector.shape_cast %5 : vector<2x1x8x128xf32> to vector<2x8x128xf32>
    %c0_7 = arith.constant 0 : index
    %c0_8 = arith.constant 0 : index
    %c0_9 = arith.constant 0 : index
    %7 = vector.load %arg3[%c0_7, %c0_8, %c0_9] : memref<2x8x128xf32, #tpu.memory_space<vmem>>, vector<2x8x128xf32>
    %8 = arith.subf %7, %4 : vector<2x8x128xf32>
    %9 = arith.mulf %8, %8 : vector<2x8x128xf32>
    %cst = arith.constant 0.000000e+00 : f32
    %10 = vector.broadcast %cst : f32 to vector<2x8x128xf32>
    %11 = arith.subf %10, %6 : vector<2x8x128xf32>
    %12 = math.exp %11 : vector<2x8x128xf32>
    %13 = arith.mulf %9, %12 : vector<2x8x128xf32>
    %14 = arith.addf %6, %13 : vector<2x8x128xf32>
    %cst_10 = arith.constant dense<0.000000e+00> : vector<8x128xf32>
    %15 = vector.multi_reduction <add>, %14, %cst_10 [0] : vector<2x8x128xf32> to vector<8x128xf32>
    %cst_11 = arith.constant dense<0.000000e+00> : vector<128xf32>
    %16 = vector.multi_reduction <add>, %15, %cst_11 [0] : vector<8x128xf32> to vector<128xf32>
    %17 = vector.shape_cast %16 : vector<128xf32> to vector<1x128xf32>
    %c0_12 = arith.constant 0 : index
    %c0_13 = arith.constant 0 : index
    %c0_14 = arith.constant 0 : index
    %18 = vector.load %arg4[%c0_12, %c0_13, %c0_14] : memref<1x1x128xf32, #tpu.memory_space<vmem>>, vector<1x1x128xf32>
    %19 = vector.shape_cast %17 : vector<1x128xf32> to vector<1x1x128xf32>
    %20 = arith.addf %18, %19 : vector<1x1x128xf32>
    %c0_15 = arith.constant 0 : index
    %c0_16 = arith.constant 0 : index
    %c0_17 = arith.constant 0 : index
    %21 = vector.load %arg4[%c0_15, %c0_16, %c0_17] : memref<1x1x128xf32, #tpu.memory_space<vmem>>, vector<1x1x128xf32>
    tpu.vector_store %arg4[%c0_15, %c0_16, %c0_17], %20 {strides = array<i32>} : memref<1x1x128xf32, #tpu.memory_space<vmem>>, vector<1x1x128xf32>,
    return
  }
  func.func @transform_0(%arg0: i32, %arg1: i32) -> (i32, i32, i32, i32) {
    %c0_i32 = arith.constant 0 : i32
    %c0_i32_0 = arith.constant 0 : i32
    %c0_i32_1 = arith.constant 0 : i32
    return %arg0, %c0_i32, %arg1, %c0_i32_0 : i32, i32, i32, i32
  }
  func.func @transform_1(%arg0: i32, %arg1: i32) -> (i32, i32, i32) {
    %c0_i32 = arith.constant 0 : i32
    %c0_i32_0 = arith.constant 0 : i32
    return %arg0, %arg1, %c0_i32 : i32, i32, i32
  }
  func.func @transform_2(%arg0: i32, %arg1: i32) -> (i32, i32, i32) {
    %c0_i32 = arith.constant 0 : i32
    %c0_i32_0 = arith.constant 0 : i32
    %c0_i32_1 = arith.constant 0 : i32
    return %arg0, %c0_i32, %c0_i32_0 : i32, i32, i32
  }
}

</mosaic_0001>

<llo_original>
// kernel: tpu_custom_call.1
$region0: #{tpu_custom_call.1}
  #allocation0 [shape = 'u32[]', space=smem, size = 0x4, offset = 0x4, fixed_abs, tag = 'smem constant byte address 0x4 - core index']
  #allocation1 [shape = 'u32[144,128]{1,0:T(1,128)}', space=vmem, size = 0x12000, scoped, tag = 'internal scratch']
  %s0 = inlined_call_operand.hbm [shape: f32[2,2,8,128], index: 0, kind: input, shape index: {}]
  %s1 = inlined_call_operand.hbm [shape: f32[2,8,128], index: 1, kind: input, shape index: {}]
  %s2 = inlined_call_operand.hbm [shape: f32[1,1,128], index: 2, kind: output, shape index: {}]
  %s3 = sld [smem:[#allocation0]]
  $region30: #{tpu_custom_call.1} parent=0
    _
  %s5 = ssub.s32 1, %s3
  %s6 = scalar_select 0, %s5, %s3
  $region1: #{tpu_custom_call.1} parent=0
    #allocation2 [shape = 'u8[16384]{0}', space=vmem, size = 0x4000, scoped, tag = 'input window, operand 0, single buffered']
    #allocation3 [shape = 's32[1]{0}', space=sflag, size = 0x4, scoped, tag = 'scoped memory for tpu_custom_call.1']
    #allocation4 [shape = 's32[1]{0}', space=sflag, size = 0x4, scoped, tag = 'scoped memory for tpu_custom_call.1']
    #allocation5 [shape = 'u8[8192]{0}', space=vmem, size = 0x2000, scoped, tag = 'input window, operand 1, single buffered']
    #allocation6 [shape = 's32[1]{0}', space=sflag, size = 0x4, scoped, tag = 'scoped memory for tpu_custom_call.1']
    #allocation7 [shape = 'u8[512]{0}', space=vmem, size = 0x400, scoped, tag = 'output window, operand 0, single buffered']
    %7 = vsyncpa [#allocation3], 0
    %8 = vsyncpa [#allocation6], 0
    %9 = vsyncpa [#allocation4], 0
    // Predicated region
    $region2: #{tpu_custom_call.1} parent=1 // pred_check
      _
    $region3: #{tpu_custom_call.1} parent=1 // pred_check_branch
      %11 = sbr.rel (0) target = $region5
    $region4: #{tpu_custom_call.1} parent=1 // pred_region
      %s13 = ssub.s32 512, 512
      %14 = vsyncadd [#allocation3], %s13
      %s15 = sshll.u32 [#allocation2], 4
      %s16 = int_to_ptr.vmem [resolvable:$true] %s15
      %21 = dma.hbm_to_vmem [thread:$0]  %s0, 512, %s16, [#allocation3], 128, 128, 8
    $region5: #{tpu_custom_call.1} parent=1 // pred_fallthru
      _
    // Predicated region
    $region6: #{tpu_custom_call.1} parent=1 // pred_check
      _
    $region7: #{tpu_custom_call.1} parent=1 // pred_check_branch
      %23 = sbr.rel (0) target = $region9
    $region8: #{tpu_custom_call.1} parent=1 // pred_region
      %s25 = ssub.s32 256, 256
      %26 = vsyncadd [#allocation6], %s25
      %s27 = sshll.u32 [#allocation5], 4
      %s28 = int_to_ptr.vmem [resolvable:$true] %s27
      %33 = dma.hbm_to_vmem [thread:$0]  %s1, 256, %s28, [#allocation6], 128, 128, 8
    $region9: #{tpu_custom_call.1} parent=1 // pred_fallthru
      _
    // Predicated region
    $region10: #{tpu_custom_call.1} parent=1 // pred_check
      _
    $region11: #{tpu_custom_call.1} parent=1 // pred_check_branch
      %35 = sbr.rel (0) target = $region13
    $region12: #{tpu_custom_call.1} parent=1 // pred_region
      %36 = dma.done [#allocation3], 512
    $region13: #{tpu_custom_call.1} parent=1 // pred_fallthru
      _
    // Predicated region
    $region14: #{tpu_custom_call.1} parent=1 // pred_check
      _
    $region15: #{tpu_custom_call.1} parent=1 // pred_check_branch
      %38 = sbr.rel (0) target = $region17
    $region16: #{tpu_custom_call.1} parent=1 // pred_region
      %39 = dma.done [#allocation6], 256
    $region17: #{tpu_custom_call.1} parent=1 // pred_fallthru
      _
    %p40 = scmp.eq.s32.totalorder 0, 0
    // Predicated region
    $region18: #{tpu_custom_call.1} parent=1 // pred_check
      %p41 = pneg %p40
    $region19: #{tpu_custom_call.1} parent=1 // pred_check_branch
      %43 = sbr.rel (%p41) target = $region21
    $region20: #{tpu_custom_call.1} parent=1 // pred_region
      %44 = vst [vmem:[#allocation7] sm:$0x1] 0.0
    $region21: #{tpu_custom_call.1} parent=1 // pred_fallthru
      _
    %v45 = vld [vmem:[#allocation2] sm:$0xff]
    %v46 = vld [vmem:[#allocation2 + $0x10] sm:$0xff]
    %s47 = scalar_lea.vmem [#allocation2], 8
    %v48 = vld [vmem:[%s47] sm:$0xff]
    %v49 = vld [vmem:[%s47 + $0x10] sm:$0xff]
    %v50 = vld [vmem:[#allocation5] sm:$0xff]
    %v51 = vld [vmem:[#allocation5 + $0x8] sm:$0xff]
    %v52 = vsub.f32 %v50, %v45
    %v53 = vsub.f32 %v51, %v46
    %v54 = vmul.f32 %v52, %v52
    %v55 = vmul.f32 %v53, %v53
    %v56 = vsub.f32 0.0, %v48
    %v57 = vsub.f32 0.0, %v49
    %v58 = vmul.f32 %v56, 1.442695
    %v59 = vpow.pop %v58
    %v60 = vmul.f32 %v57, 1.442695
    %v61 = vpow.pop %v60
    %v62 = vmul.f32 %v54, %v59
    %v63 = vmul.f32 %v55, %v61
    %v64 = vadd.f32 %v48, %v62
    %v65 = vadd.f32 %v49, %v63
    %v66 = vadd.f32 %v64, %v65
    %v67 = vrot.slane %v66, 4
    %v68 = vadd.f32 %v66, %v67
    %v69 = vrot.slane %v68, 2
    %v70 = vadd.f32 %v68, %v69
    %v71 = vrot.slane %v70, 1
    %v72 = vadd.f32 %v70, %v71
    %v73 = vld [vmem:[#allocation7] sm:$0x1]
    %v74 = vadd.f32 %v73, %v72
    %75 = vst [vmem:[#allocation7] sm:$0x1] %v74
    // Predicated region
    $region22: #{tpu_custom_call.1} parent=1 // pred_check
      _
    $region23: #{tpu_custom_call.1} parent=1 // pred_check_branch
      %77 = sbr.rel (0) target = $region25
    $region24: #{tpu_custom_call.1} parent=1 // pred_region
      %s79 = ssub.s32 16, 16
      %80 = vsyncadd [#allocation4], %s79
      %s82 = sshll.u32 [#allocation7], 4
      %s83 = int_to_ptr.vmem [resolvable:$true] %s82
      %85 = dma.vmem_to_hbm [thread:$0]  %s83, 16, %s2, [#allocation4]
    $region25: #{tpu_custom_call.1} parent=1 // pred_fallthru
      _
    // Predicated region
    $region26: #{tpu_custom_call.1} parent=1 // pred_check
      _
    $region27: #{tpu_custom_call.1} parent=1 // pred_check_branch
      %87 = sbr.rel (0) target = $region29
    $region28: #{tpu_custom_call.1} parent=1 // pred_region
      %88 = dma.done [#allocation4], 16
    $region29: #{tpu_custom_call.1} parent=1 // pred_fallthru
      _
    %89 = vsyncpa [#allocation3], 1
    %90 = vsyncpa [#allocation6], 1
    %91 = vsyncpa [#allocation4], 1

</llo_original>
